<compile_context>
chip_gen: v6e
topology: v6e:2x2x1
jax: 0.10.0
libtpu: 0.0.40
codegen_flags: <defaults>
</compile_context>

<pallas_src>
import numpy as np
import jax
import jax.numpy as jnp
from jax.experimental import pallas as pl
from jax.experimental.pallas import tpu as pltpu

POOL_SIZES = (1, 2, 4)


# ---------------------------------------------------------------------------
# Operator construction (host-side glue, deterministic, float64 -> bf16/f32)
# ---------------------------------------------------------------------------
def _adaptive_pool_matrix(in_size: int, out_size: int) -> np.ndarray:
    """A[i, j] so that (A @ v) == adaptive_avg_pool1d(v, out_size)."""
    A = np.zeros((out_size, in_size), dtype=np.float64)
    for i in range(out_size):
        start = (i * in_size) // out_size
        end = -(-(i + 1) * in_size // out_size)  # ceil division
        A[i, start:end] = 1.0 / (end - start)
    return A


def _bilinear_upsample_matrix(out_size: int, in_size: int) -> np.ndarray:
    """U[i, j] so that (U @ v) == bilinear upsample (align_corners=False)."""
    U = np.zeros((out_size, in_size), dtype=np.float64)
    if in_size == 1:
        U[:, 0] = 1.0
        return U
    scale = in_size / out_size
    for i in range(out_size):
        src = max((i + 0.5) * scale - 0.5, 0.0)
        i0 = min(int(np.floor(src)), in_size - 1)
        i1 = min(i0 + 1, in_size - 1)
        lam = src - i0
        U[i, i0] += 1.0 - lam
        U[i, i1] += lam
    return U


def _pool_upsample_matrix(size: int, pool_size: int) -> np.ndarray:
    """M so that M @ v == bilinear_upsample(adaptive_avg_pool(v, pool_size))."""
    return _bilinear_upsample_matrix(size, pool_size) @ _adaptive_pool_matrix(size, pool_size)


def _fused_operator(H: int, W: int) -> np.ndarray:
    """K_all (H*W, P*H*W): row-major vec(x) @ K_all == [vec(M_h x M_w^T) for each s]."""
    blocks = []
    for s in POOL_SIZES:
        mh = _pool_upsample_matrix(H, s)          # (H, H)
        mw = _pool_upsample_matrix(W, s)          # (W, W)
        k = np.kron(mh, mw)                       # (H*W, H*W): vec(M_h x M_w^T) = k @ vec(x)
        blocks.append(k.T)                        # so that vec(x) @ k.T gives the feature
    return np.concatenate(blocks, axis=1)         # (H*W, P*H*W)


# ---------------------------------------------------------------------------
# Pallas kernel: per-pool-slot bf16 MXU matmuls + fused concat writes
# ---------------------------------------------------------------------------
def _spp_kernel(k_ref, x_ref, o_ref):
    # k_ref: (HW, P*HW) bf16 fused pool+upsample operator (constant index_map ->
    #        stays resident in VMEM across grid steps).
    # x_ref: (BN, BC, HW) input block.
    # o_ref: (BN, P+1, BC, HW) output block; slots 0..P-1 = pyramid feats, slot P = x.
    n_pool = len(POOL_SIZES)
    bn, bc, hw = x_ref.shape

    x3 = x_ref[...]                                   # (BN, BC, HW), original dtype
    # Flatten rows for the MXU.  Layout-free: bn > 1 is only chosen when bc % 8 == 0;
    # for bn == 1 this just drops a leading unit dim.
    x2 = x3.reshape(bn * bc, hw)
    xb = x2.astype(jnp.bfloat16)

    # One matmul per pool slot, written straight into the output ref (no (M, 3*HW)
    # intermediate copy pass).  Column slices at multiples of HW (>=128) are
    # tile-aligned, so no relayout.
    for s in range(n_pool):
        f = jnp.dot(xb, k_ref[:, s * hw:(s + 1) * hw],
                    preferred_element_type=jnp.float32)        # (BN*BC, HW) f32
        o_ref[:, s] = f.reshape(bn, bc, hw).astype(o_ref.dtype)

    # torch.cat's trailing [x]: exact passthrough (not the bf16-cast copy).
    o_ref[:, n_pool] = x3.astype(o_ref.dtype)


# ---------------------------------------------------------------------------
# Block-size selection (generation-aware, hardened against awkward N / C)
# ---------------------------------------------------------------------------
def _choose_blocking(N, C, HW, itemsize, kall_bytes, budget_bytes):
    """Pick (batch_block, channel_block, per-step VMEM bytes) for grid (N//bn, C//bc)."""
    P = len(POOL_SIZES)

    def step_bytes(rows):
        io = 2 * (1 + (P + 1)) * rows * HW * itemsize   # double-buffered in + out blocks
        tmp = rows * HW * (2 + 4 + 4)                    # bf16 x copy + live f32 results
        return io + tmp + 2 * kall_bytes                 # operator (double-buffered)

    # Channel block: a multiple of 8 dividing C, or C itself (the (8,128) rule).
    cands = sorted({d for d in range(8, C + 1, 8) if C % d == 0} | {C}, reverse=True)
    bc = next((c for c in cands if step_bytes(c) <= budget_bytes), min(cands))

    # Batch block: grow MXU rows toward ~512 to amortize operator weight pushes,
    # while keeping >= 2 grid steps (megacore / dual-TC) and staying inside budget.
    bn = 1
    if bc % 8 == 0:
        min_steps = 2 if N * (C // bc) >= 2 else 1
        for cand in range(2, N + 1):
            if N % cand:
                continue
            rows = cand * bc
            if rows > 512 or step_bytes(rows) > budget_bytes:
                break
            if (N // cand) * (C // bc) < min_steps:
                break
            bn = cand
    return bn, bc, step_bytes(bn * bc)


# ---------------------------------------------------------------------------
# Wrapper
# ---------------------------------------------------------------------------
def spatial_pyramid_pooling(x: jax.Array) -> jax.Array:
    """x: (N, C, H, W) -> (N, 4*C, H, W); channel order == torch.cat([f1,f2,f4,x], 1)."""
    N, C, H, W = x.shape
    P = len(POOL_SIZES)
    HW = H * W

    kall_bytes = 2 * HW * P * HW                        # bf16 operator
    # TODO(synk): for large H*W (Kronecker operator > ~16 MiB) fall back to the
    # separable two-matmul form M_h @ x @ M_w^T instead of the fused kron matmul.
    assert kall_bytes <= (16 << 20), "fused Kronecker path is sized for small H*W"

    k_all = jnp.asarray(_fused_operator(H, W), dtype=jnp.bfloat16)   # (HW, P*HW)
    x_flat = x.reshape(N, C, HW)

    # Generation-aware VMEM sizing (v7x: 64 MiB per TC; v5e/v6e: 128 MiB).
    try:
        vmem_cap = int(pltpu.get_tpu_info().vmem_capacity_bytes)
    except Exception:
        vmem_cap = 64 << 20                             # conservative (v7x per-TC) default
    budget = min(vmem_cap // 5, 24 << 20)               # double-buffered working-set target
    bn, bc, step_bytes = _choose_blocking(N, C, HW, x.dtype.itemsize, kall_bytes, budget)
    vmem_limit = int(min(max(step_bytes + (2 << 20), 16 << 20),
                         min(vmem_cap // 2, 48 << 20)))

    grid = (N // bn, C // bc)

    out = pl.pallas_call(
        _spp_kernel,
        out_shape=jax.ShapeDtypeStruct((N, P + 1, C, HW), x.dtype),
        grid=grid,
        in_specs=[
            # Operator: constant index_map, so the same VMEM block is reused across
            # all grid steps (bf16 halves its footprint vs the old f32 version).
            pl.BlockSpec((HW, P * HW), lambda nb, cb: (0, 0)),
            pl.BlockSpec((bn, bc, HW), lambda nb, cb: (nb, cb, 0)),
        ],
        out_specs=pl.BlockSpec((bn, P + 1, bc, HW), lambda nb, cb: (nb, 0, cb, 0)),
        compiler_params=pltpu.CompilerParams(
            dimension_semantics=("parallel", "parallel"),
            vmem_limit_bytes=vmem_limit,
        ),
    )(k_all, x_flat)

    # (N, 4, C, HW) -> (N, 4*C, H, W): contiguous reshape (torch.cat fused in-kernel,
    # no extra HBM pass); channel ordering matches torch.cat([f1, f2, f4, x], dim=1).
    return out.reshape(N, (P + 1) * C, H, W)


# ---------------------------------------------------------------------------
# Pure-JAX f32 reference (same linear-operator math) for a sanity check.
# ---------------------------------------------------------------------------
def _reference(x: jax.Array) -> jax.Array:
    N, C, H, W = x.shape
    feats = []
    for s in POOL_SIZES:
        mh = jnp.asarray(_pool_upsample_matrix(H, s), dtype=jnp.float32)
        mw = jnp.asarray(_pool_upsample_matrix(W, s), dtype=jnp.float32)
        # f[n,c,h,w] = sum_{k,l} mh[h,k] * x[n,c,k,l] * mw[w,l]  ==  M_h @ x @ M_w^T
        f = jnp.einsum("hk,nckl,wl->nchw", mh, x, mw)
        feats.append(f)
    return jnp.concatenate(feats + [x], axis=1)


if __name__ == "__main__":
    key = jax.random.PRNGKey(0)
    N, C, H, W = 2, 4, 16, 16
    x = jax.random.normal(key, (N, C, H, W), dtype=jnp.float32)

    out = jax.jit(spatial_pyramid_pooling)(x)
    out = jax.block_until_ready(out)

    assert out.shape == (N, 4 * C, H, W), out.shape

    ref = _reference(x)
    # bf16 operands on the MXU (f32 accumulate): loosen tolerance accordingly.
    np.testing.assert_allclose(np.asarray(out), np.asarray(ref), rtol=2e-2, atol=2e-2)

    print("KERNEL_OK")
</pallas_src>

<mosaic_0001>
module attributes {stable_mosaic.version = 11 : i64} {
  func.func @_spp_kernel(%arg0: i32, %arg1: i32, %arg2: memref<256x768xbf16, #tpu.memory_space<vmem>>, %arg3: memref<1x4x256xf32, #tpu.memory_space<vmem>>, %arg4: memref<1x4x4x256xf32, #tpu.memory_space<vmem>>) attributes {dimension_semantics = [#tpu.dimension_semantics<parallel>, #tpu.dimension_semantics<parallel>], iteration_bounds = array<i64: 2, 1>, scalar_prefetch = 0 : i64, scratch_operands = 0 : i64, tpu.core_type = #tpu.core_type<tc>, window_params = [{pipeline_mode = #tpu.pipeline_mode<synchronous>, transform_indices = @transform_0, window_bounds = array<i64: 256, 768>}, {transform_indices = @transform_1, window_bounds = array<i64: 1, 4, 256>}, {transform_indices = @transform_2, window_bounds = array<i64: 1, 4, 4, 256>}]} {
    %c0 = arith.constant 0 : index
    %c0_0 = arith.constant 0 : index
    %c0_1 = arith.constant 0 : index
    %0 = vector.load %arg3[%c0, %c0_0, %c0_1] : memref<1x4x256xf32, #tpu.memory_space<vmem>>, vector<1x4x256xf32>
    %1 = vector.shape_cast %0 : vector<1x4x256xf32> to vector<4x256xf32>
    %2 = arith.truncf %1 : vector<4x256xf32> to vector<4x256xbf16>
    %c0_2 = arith.constant 0 : index
    %c0_3 = arith.constant 0 : index
    %3 = vector.load %arg2[%c0_2, %c0_3] : memref<256x768xbf16, #tpu.memory_space<vmem>>, vector<256x256xbf16>
    %cst = arith.constant dense<0.000000e+00> : vector<4x256xf32>
    %4 = tpu.matmul %2, %3, %cst {dimension_numbers = #tpu.dot_dimension_numbers<[1], [0], [0], [1], [0, 0, 1, 1], [], []>} : vector<4x256xbf16>, vector<256x256xbf16>, vector<4x256xf32> -> vector<4x256xf32>
    %5 = vector.shape_cast %4 : vector<4x256xf32> to vector<1x4x256xf32>
    %c0_4 = arith.constant 0 : index
    %c0_5 = arith.constant 0 : index
    %c0_6 = arith.constant 0 : index
    %c0_7 = arith.constant 0 : index
    %6 = vector.load %arg4[%c0_4, %c0_5, %c0_6, %c0_7] : memref<1x4x4x256xf32, #tpu.memory_space<vmem>>, vector<1x1x4x256xf32>
    %7 = vector.shape_cast %6 : vector<1x1x4x256xf32> to vector<1x4x256xf32>
    %8 = vector.shape_cast %5 : vector<1x4x256xf32> to vector<1x1x4x256xf32>
    tpu.vector_store %arg4[%c0_4, %c0_5, %c0_6, %c0_7], %8 {strides = array<i32>} : memref<1x4x4x256xf32, #tpu.memory_space<vmem>>, vector<1x1x4x256xf32>,
    %c0_8 = arith.constant 0 : index
    %c256 = arith.constant 256 : index
    %9 = vector.load %arg2[%c0_8, %c256] : memref<256x768xbf16, #tpu.memory_space<vmem>>, vector<256x256xbf16>
    %cst_9 = arith.constant dense<0.000000e+00> : vector<4x256xf32>
    %10 = tpu.matmul %2, %9, %cst_9 {dimension_numbers = #tpu.dot_dimension_numbers<[1], [0], [0], [1], [0, 0, 1, 1], [], []>} : vector<4x256xbf16>, vector<256x256xbf16>, vector<4x256xf32> -> vector<4x256xf32>
    %11 = vector.shape_cast %10 : vector<4x256xf32> to vector<1x4x256xf32>
    %c0_10 = arith.constant 0 : index
    %c1 = arith.constant 1 : index
    %c0_11 = arith.constant 0 : index
    %c0_12 = arith.constant 0 : index
    %12 = vector.load %arg4[%c0_10, %c1, %c0_11, %c0_12] : memref<1x4x4x256xf32, #tpu.memory_space<vmem>>, vector<1x1x4x256xf32>
    %13 = vector.shape_cast %12 : vector<1x1x4x256xf32> to vector<1x4x256xf32>
    %14 = vector.shape_cast %11 : vector<1x4x256xf32> to vector<1x1x4x256xf32>
    tpu.vector_store %arg4[%c0_10, %c1, %c0_11, %c0_12], %14 {strides = array<i32>} : memref<1x4x4x256xf32, #tpu.memory_space<vmem>>, vector<1x1x4x256xf32>,
    %c0_13 = arith.constant 0 : index
    %c512 = arith.constant 512 : index
    %15 = vector.load %arg2[%c0_13, %c512] : memref<256x768xbf16, #tpu.memory_space<vmem>>, vector<256x256xbf16>
    %cst_14 = arith.constant dense<0.000000e+00> : vector<4x256xf32>
    %16 = tpu.matmul %2, %15, %cst_14 {dimension_numbers = #tpu.dot_dimension_numbers<[1], [0], [0], [1], [0, 0, 1, 1], [], []>} : vector<4x256xbf16>, vector<256x256xbf16>, vector<4x256xf32> -> vector<4x256xf32>
    %17 = vector.shape_cast %16 : vector<4x256xf32> to vector<1x4x256xf32>
    %c0_15 = arith.constant 0 : index
    %c2 = arith.constant 2 : index
    %c0_16 = arith.constant 0 : index
    %c0_17 = arith.constant 0 : index
    %18 = vector.load %arg4[%c0_15, %c2, %c0_16, %c0_17] : memref<1x4x4x256xf32, #tpu.memory_space<vmem>>, vector<1x1x4x256xf32>
    %19 = vector.shape_cast %18 : vector<1x1x4x256xf32> to vector<1x4x256xf32>
    %20 = vector.shape_cast %17 : vector<1x4x256xf32> to vector<1x1x4x256xf32>
    tpu.vector_store %arg4[%c0_15, %c2, %c0_16, %c0_17], %20 {strides = array<i32>} : memref<1x4x4x256xf32, #tpu.memory_space<vmem>>, vector<1x1x4x256xf32>,
    %c0_18 = arith.constant 0 : index
    %c3 = arith.constant 3 : index
    %c0_19 = arith.constant 0 : index
    %c0_20 = arith.constant 0 : index
    %21 = vector.load %arg4[%c0_18, %c3, %c0_19, %c0_20] : memref<1x4x4x256xf32, #tpu.memory_space<vmem>>, vector<1x1x4x256xf32>
    %22 = vector.shape_cast %21 : vector<1x1x4x256xf32> to vector<1x4x256xf32>
    %23 = vector.shape_cast %0 : vector<1x4x256xf32> to vector<1x1x4x256xf32>
    tpu.vector_store %arg4[%c0_18, %c3, %c0_19, %c0_20], %23 {strides = array<i32>} : memref<1x4x4x256xf32, #tpu.memory_space<vmem>>, vector<1x1x4x256xf32>,
    return
  }
  func.func @transform_0(%arg0: i32, %arg1: i32) -> (i32, i32) {
    %c0_i32 = arith.constant 0 : i32
    %c0_i32_0 = arith.constant 0 : i32
    %c0_i32_1 = arith.constant 0 : i32
    return %c0_i32, %c0_i32_0 : i32, i32
  }
  func.func @transform_1(%arg0: i32, %arg1: i32) -> (i32, i32, i32) {
    %c0_i32 = arith.constant 0 : i32
    %c0_i32_0 = arith.constant 0 : i32
    return %arg0, %arg1, %c0_i32 : i32, i32, i32
  }
  func.func @transform_2(%arg0: i32, %arg1: i32) -> (i32, i32, i32, i32) {
    %c0_i32 = arith.constant 0 : i32
    %c0_i32_0 = arith.constant 0 : i32
    %c0_i32_1 = arith.constant 0 : i32
    return %arg0, %c0_i32, %arg1, %c0_i32_0 : i32, i32, i32, i32
  }
}

</mosaic_0001>

<llo_original>
// kernel: spatial_pyramid_pooling.1
$region0: #{spatial_pyramid_pooling.1}
  #allocation0 [shape = 'u32[]', space=smem, size = 0x4, offset = 0x4, fixed_abs, tag = 'smem constant byte address 0x4 - core index']
  #allocation1 [shape = 'u32[144,128]{1,0:T(1,128)}', space=vmem, size = 0x12000, scoped, tag = 'internal scratch']
  %s0 = inlined_call_operand.hbm [shape: bf16[256,768], index: 0, kind: input, shape index: {}]
  %s1 = inlined_call_operand.vmem [shape: f32[2,4,256], index: 1, kind: input, shape index: {}]
  %s2 = inlined_call_operand.vmem [shape: f32[2,4,4,256], index: 2, kind: output, shape index: {}]
  %s3 = sld [smem:[#allocation0]]
  $region45: #{spatial_pyramid_pooling.1} parent=0
    _
  %s5 = ssub.s32 1, %s3
  %s6 = scalar_select 0, %s5, %s3
  $region1: #{spatial_pyramid_pooling.1} parent=0
    #allocation2 [shape = 'u8[393216]{0}', space=vmem, size = 0x60000, scoped, tag = 'input window, operand 0, single buffered']
    #allocation3 [shape = 's32[2]{0}', space=sflag, size = 0x8, scoped, tag = 'scoped memory for spatial_pyramid_pooling.1']
    %7 = vsyncpa [#allocation3], 0
    loop: start=0, step=1, limit=4
    $region2: #{spatial_pyramid_pooling.1} parent=1 // loop_pre_header
      _
    $region3: #{spatial_pyramid_pooling.1} parent=1 // loop_header
      %s9 = sphi 0, %s13
      %p10 = scmp.ge.s32.totalorder %s9, 4
      %s16 = sphi 0, %s28
      %s17 = sphi 0, %s24
      %s18 = sphi 0, %s16
      %s19 = sphi 0, %s17
      %s20 = sphi 0, %s18
      %s21 = sphi 0, %s19
      %s29 = sphi 0, %s29
      %s31 = sphi 0, %s29
      %s32 = sphi 0, %s31
      %s46 = sphi 0, %s32
      %s54 = sphi 0, %s56
      %s57 = sphi 0, %s54
      %s58 = sphi 0, %s57
      %s74 = sphi 0, %s58
      %s82 = sphi 0, %s84
      %s85 = sphi 0, %s82
      %s86 = sphi 0, %s85
      %s102 = sphi 0, %s86
    $region4: #{spatial_pyramid_pooling.1} parent=1 // loop_header_branch
      %12 = sbr.rel (%p10) target = $region8
    $region5: #{spatial_pyramid_pooling.1} parent=1 // loop_body
      %s14 = ssub.s32 %s9, 1
      %s15 = ssub.s32 %s9, 2
      %s22 = sadd.s32 1, %s17
      %p23 = scmp.ge.s32.totalorder %s22, 1
      %s24 = scalar_select %p23, 0, %s22
      %s25 = sadd.s32 1, %s16
      %s26 = scalar_select %p23, %s25, %s16
      %p27 = scmp.ge.s32.totalorder %s26, 2
      %s28 = scalar_select %p27, 0, %s26
      %s30 = sadd.s32 %s29, 1
      %p33 = scmp.eq.s32.totalorder %s9, 1
      %p34 = scmp.ne.s32.totalorder %s29, %s31
      %p35 = scmp.eq.s32.totalorder %s9, 0
      %p36 = por %p34, %p35
      %p37 = scmp.ne.s32.totalorder %s29, %s31
      %p38 = scmp.eq.s32.totalorder %s14, 1
      %p39 = por %p37, %p38
      %p40 = scmp.ne.s32.totalorder %s31, %s32
      %p41 = scmp.eq.s32.totalorder %s14, 0
      %p42 = por %p40, %p41
      %p43 = scmp.ne.s32.totalorder %s31, %s32
      %p44 = scmp.eq.s32.totalorder %s15, 1
      %p45 = por %p43, %p44
      %p47 = scmp.ne.s32.totalorder %s32, %s46
      %p48 = scmp.eq.s32.totalorder %s15, 0
      %p49 = por %p47, %p48
      %s50 = ssub.s32 %s16, %s28
      %s51 = ssub.s32 %s17, %s24
      %s52 = sor.u32 %s50, %s51
      %p53 = scmp.eq.s32.totalorder %s52, 0
      %s55 = sadd.s32 %s54, 1
      %s56 = scalar_select %p53, %s54, %s55
      %p59 = pneg %p53
      %p60 = scmp.eq.s32.totalorder %s9, 1
      %p61 = por %p59, %p60
      %p62 = scmp.ne.s32.totalorder %s54, %s57
      %p63 = scmp.eq.s32.totalorder %s9, 0
      %p64 = por %p62, %p63
      %p65 = scmp.ne.s32.totalorder %s54, %s57
      %p66 = scmp.eq.s32.totalorder %s14, 1
      %p67 = por %p65, %p66
      %p68 = scmp.ne.s32.totalorder %s57, %s58
      %p69 = scmp.eq.s32.totalorder %s14, 0
      %p70 = por %p68, %p69
      %p71 = scmp.ne.s32.totalorder %s57, %s58
      %p72 = scmp.eq.s32.totalorder %s15, 1
      %p73 = por %p71, %p72
      %p75 = scmp.ne.s32.totalorder %s58, %s74
      %p76 = scmp.eq.s32.totalorder %s15, 0
      %p77 = por %p75, %p76
      %s78 = ssub.s32 %s16, %s28
      %s79 = ssub.s32 %s17, %s24
      %s80 = sor.u32 %s78, %s79
      %p81 = scmp.eq.s32.totalorder %s80, 0
      %s83 = sadd.s32 %s82, 1
      %s84 = scalar_select %p81, %s82, %s83
      %p87 = pneg %p81
      %p88 = scmp.eq.s32.totalorder %s9, 1
      %p89 = por %p87, %p88
      %p90 = scmp.ne.s32.totalorder %s82, %s85
      %p91 = scmp.eq.s32.totalorder %s9, 0
      %p92 = por %p90, %p91
      %p93 = scmp.ne.s32.totalorder %s82, %s85
      %p94 = scmp.eq.s32.totalorder %s14, 1
      %p95 = por %p93, %p94
      %p96 = scmp.ne.s32.totalorder %s85, %s86
      %p97 = scmp.eq.s32.totalorder %s14, 0
      %p98 = por %p96, %p97
      %p99 = scmp.ne.s32.totalorder %s85, %s86
      %p100 = scmp.eq.s32.totalorder %s15, 1
      %p101 = por %p99, %p100
      %p103 = scmp.ne.s32.totalorder %s86, %s102
      %p104 = scmp.eq.s32.totalorder %s15, 0
      %p105 = por %p103, %p104
      %p106 = scmp.le.s32.totalorder 1, %s9
      %p107 = scmp.lt.s32.totalorder %s9, 3
      %p108 = pnand %p106, %p107
      %p109 = pneg %p108
      // Predicated region
      $region9: #{spatial_pyramid_pooling.1} parent=5 // pred_check
        _
      $region10: #{spatial_pyramid_pooling.1} parent=5 // pred_check_branch
        %111 = sbr.rel (%p108) target = $region12
      $region11: #{spatial_pyramid_pooling.1} parent=5 // pred_region
        %s112 = ssub.s32 %s9, 1
        // Predicated region
        $region13: #{spatial_pyramid_pooling.1} parent=11 // pred_check
          %p113 = pneg %p42
        $region14: #{spatial_pyramid_pooling.1} parent=11 // pred_check_branch
          %115 = sbr.rel (%p113) target = $region16
        $region15: #{spatial_pyramid_pooling.1} parent=11 // pred_region
          %s117 = ssub.s32 12288, 12288
          %118 = vsyncadd [#allocation3], %s117
          %s119 = sshll.u32 [#allocation2], 4
          %s120 = int_to_ptr.vmem [resolvable:$true] %s119
          %125 = dma.hbm_to_vmem [thread:$0]  %s0, 12288, %s120, [#allocation3], 384, 384, 24
        $region16: #{spatial_pyramid_pooling.1} parent=11 // pred_fallthru
          _
      $region12: #{spatial_pyramid_pooling.1} parent=5 // pred_fallthru
        _
      %p126 = scmp.lt.s32.totalorder %s9, 2
      // Predicated region
      $region17: #{spatial_pyramid_pooling.1} parent=5 // pred_check
        %p127 = pneg %p126
      $region18: #{spatial_pyramid_pooling.1} parent=5 // pred_check_branch
        %129 = sbr.rel (%p127) target = $region20
      $region19: #{spatial_pyramid_pooling.1} parent=5 // pred_region
        // Predicated region
        $region21: #{spatial_pyramid_pooling.1} parent=19 // pred_check
          %p130 = pneg %p64
        $region22: #{spatial_pyramid_pooling.1} parent=19 // pred_check_branch
          %132 = sbr.rel (%p130) target = $region24
        $region23: #{spatial_pyramid_pooling.1} parent=19 // pred_region
          %p133 = scmp.lt.s32.totalorder %s16, 1
          %s134 = scalar_select %p133, %s16, 1
          %p135 = scmp.lt.s32.totalorder %s17, 0
          %s136 = scalar_select %p135, %s17, 0
          %s137 = smul.addr %s136, 2
          %s138 = smul.addr %s134, 2
          %s139 = sadd.s32 %s137, %s138
          %s140 = smul.addr %s139, 4
          %s141 = scalar_lea.vmem %s1, %s140
        $region24: #{spatial_pyramid_pooling.1} parent=19 // pred_fallthru
          _
      $region20: #{spatial_pyramid_pooling.1} parent=5 // pred_fallthru
        _
      %p142 = scmp.le.s32.totalorder 1, %s9
      %p143 = scmp.lt.s32.totalorder %s9, 3
      %p144 = pnand %p142, %p143
      %p145 = pneg %p144
      // Predicated region
      $region25: #{spatial_pyramid_pooling.1} parent=5 // pred_check
        _
      $region26: #{spatial_pyramid_pooling.1} parent=5 // pred_check_branch
        %147 = sbr.rel (%p144) target = $region28
      $region27: #{spatial_pyramid_pooling.1} parent=5 // pred_region
        %s148 = ssub.s32 %s9, 1
        // Predicated region
        $region29: #{spatial_pyramid_pooling.1} parent=27 // pred_check
          %p149 = pneg %p42
        $region30: #{spatial_pyramid_pooling.1} parent=27 // pred_check_branch
          %151 = sbr.rel (%p149) target = $region32
        $region31: #{spatial_pyramid_pooling.1} parent=27 // pred_region
          %152 = dma.done [#allocation3], 12288
        $region32: #{spatial_pyramid_pooling.1} parent=27 // pred_fallthru
          _
        %p153 = pneg %p42
        %p154 = pneg %p39
        %p155 = scmp.lt.s32.totalorder %s18, 1
        %s156 = scalar_select %p155, %s18, 1
        %p157 = scmp.lt.s32.totalorder %s19, 0
        %s158 = scalar_select %p157, %s19, 0
        %s159 = smul.addr %s158, 2
        %s160 = smul.addr %s156, 2
        %s161 = sadd.s32 %s159, %s160
        %s162 = smul.addr %s161, 4
        %s163 = scalar_lea.vmem %s1, %s162
        %p164 = pneg %p70
        %p165 = pneg %p67
        %p166 = pneg %p98
        %p167 = pneg %p95
        %p168 = scmp.lt.s32.totalorder %s18, 1
        %s169 = scalar_select %p168, %s18, 1
        %p170 = scmp.lt.s32.totalorder %s19, 0
        %s171 = scalar_select %p170, %s19, 0
        %s172 = smul.addr %s171, 2
        %s173 = smul.addr %s169, 8
        %s174 = sadd.s32 %s172, %s173
        %s175 = smul.addr %s174, 4
        %s176 = scalar_lea.vmem %s2, %s175
        %p177 = scmp.lt.s32.totalorder %s18, 1
        %s178 = scalar_select %p177, %s18, 1
        %p179 = scmp.lt.s32.totalorder %s19, 0
        %s180 = scalar_select %p179, %s19, 0
        %s181 = smul.addr %s180, 2
        %s182 = smul.addr %s178, 2
        %s183 = sadd.s32 %s181, %s182
        %s184 = smul.addr %s183, 4
        %s185 = scalar_lea.vmem %s1, %s184
        %p186 = scmp.lt.s32.totalorder %s18, 1
        %s187 = scalar_select %p186, %s18, 1
        %p188 = scmp.lt.s32.totalorder %s19, 0
        %s189 = scalar_select %p188, %s19, 0
        %s190 = smul.addr %s189, 2
        %s191 = smul.addr %s187, 8
        %s192 = sadd.s32 %s190, %s191
        %s193 = smul.addr %s192, 4
        %s194 = scalar_lea.vmem %s2, %s193
        %v195 = vld [vmem:[%s185] sm:$0xff]
        %v197 = vcombine.high %v195, %v195
        %v199 = vpack.c.bf16 %v195, %v195
        %v200 = vpack.c.bf16 %v197, %v197
        %v201 = vld [vmem:[#allocation2] sm:$0xff]
        %v202 = vld [vmem:[#allocation2 + $0x18] sm:$0xff]
        %v203 = vld [vmem:[#allocation2 + $0x30] sm:$0xff]
        %v204 = vld [vmem:[#allocation2 + $0x48] sm:$0xff]
        %v205 = vld [vmem:[#allocation2 + $0x60] sm:$0xff]
        %v206 = vld [vmem:[#allocation2 + $0x78] sm:$0xff]
        %v207 = vld [vmem:[#allocation2 + $0x90] sm:$0xff]
        %v208 = vld [vmem:[#allocation2 + $0xa8] sm:$0xff]
        %v209 = vld [vmem:[#allocation2 + $0xc0] sm:$0xff]
        %v210 = vld [vmem:[#allocation2 + $0xd8] sm:$0xff]
        %v211 = vld [vmem:[#allocation2 + $0xf0] sm:$0xff]
        %v212 = vld [vmem:[#allocation2 + $0x108] sm:$0xff]
        %v213 = vld [vmem:[#allocation2 + $0x120] sm:$0xff]
        %v214 = vld [vmem:[#allocation2 + $0x138] sm:$0xff]
        %v215 = vld [vmem:[#allocation2 + $0x150] sm:$0xff]
        %v216 = vld [vmem:[#allocation2 + $0x168] sm:$0xff]
        %v217 = vld [vmem:[#allocation2 + $0x180] sm:$0xff]
        %v218 = vld [vmem:[#allocation2 + $0x198] sm:$0xff]
        %v219 = vld [vmem:[#allocation2 + $0x1b0] sm:$0xff]
        %v220 = vld [vmem:[#allocation2 + $0x1c8] sm:$0xff]
        %v221 = vld [vmem:[#allocation2 + $0x1e0] sm:$0xff]
        %v222 = vld [vmem:[#allocation2 + $0x1f8] sm:$0xff]
        %v223 = vld [vmem:[#allocation2 + $0x210] sm:$0xff]
        %v224 = vld [vmem:[#allocation2 + $0x228] sm:$0xff]
        %v225 = vld [vmem:[#allocation2 + $0x240] sm:$0xff]
        %v226 = vld [vmem:[#allocation2 + $0x258] sm:$0xff]
        %v227 = vld [vmem:[#allocation2 + $0x270] sm:$0xff]
        %v228 = vld [vmem:[#allocation2 + $0x288] sm:$0xff]
        %v229 = vld [vmem:[#allocation2 + $0x2a0] sm:$0xff]
        %v230 = vld [vmem:[#allocation2 + $0x2b8] sm:$0xff]
        %v231 = vld [vmem:[#allocation2 + $0x2d0] sm:$0xff]
        %v232 = vld [vmem:[#allocation2 + $0x2e8] sm:$0xff]
        %v265 = vunpack.c.l.b16 %v201
        %v266 = vunpack.c.h.b16 %v201
        %v267 = vunpack.c.l.b16 %v202
        %v268 = vunpack.c.h.b16 %v202
        %v269 = vunpack.c.l.b16 %v203
        %v270 = vunpack.c.h.b16 %v203
        %v271 = vunpack.c.l.b16 %v204
        %v272 = vunpack.c.h.b16 %v204
        %v273 = vunpack.c.l.b16 %v205
        %v274 = vunpack.c.h.b16 %v205
        %v275 = vunpack.c.l.b16 %v206
        %v276 = vunpack.c.h.b16 %v206
        %v277 = vunpack.c.l.b16 %v207
        %v278 = vunpack.c.h.b16 %v207
        %v279 = vunpack.c.l.b16 %v208
        %v280 = vunpack.c.h.b16 %v208
        %v281 = vunpack.c.l.b16 %v209
        %v282 = vunpack.c.h.b16 %v209
        %v283 = vunpack.c.l.b16 %v210
        %v284 = vunpack.c.h.b16 %v210
        %v285 = vunpack.c.l.b16 %v211
        %v286 = vunpack.c.h.b16 %v211
        %v287 = vunpack.c.l.b16 %v212
        %v288 = vunpack.c.h.b16 %v212
        %v289 = vunpack.c.l.b16 %v213
        %v290 = vunpack.c.h.b16 %v213
        %v291 = vunpack.c.l.b16 %v214
        %v292 = vunpack.c.h.b16 %v214
        %v293 = vunpack.c.l.b16 %v215
        %v294 = vunpack.c.h.b16 %v215
        %v295 = vunpack.c.l.b16 %v216
        %v296 = vunpack.c.h.b16 %v216
        %v297 = vunpack.c.l.b16 %v217
        %v298 = vunpack.c.h.b16 %v217
        %v299 = vunpack.c.l.b16 %v218
        %v300 = vunpack.c.h.b16 %v218
        %v301 = vunpack.c.l.b16 %v219
        %v302 = vunpack.c.h.b16 %v219
        %v303 = vunpack.c.l.b16 %v220
        %v304 = vunpack.c.h.b16 %v220
        %v305 = vunpack.c.l.b16 %v221
        %v306 = vunpack.c.h.b16 %v221
        %v307 = vunpack.c.l.b16 %v222
        %v308 = vunpack.c.h.b16 %v222
        %v309 = vunpack.c.l.b16 %v223
        %v310 = vunpack.c.h.b16 %v223
        %v311 = vunpack.c.l.b16 %v224
        %v312 = vunpack.c.h.b16 %v224
        %v313 = vunpack.c.l.b16 %v225
        %v314 = vunpack.c.h.b16 %v225
        %v315 = vunpack.c.l.b16 %v226
        %v316 = vunpack.c.h.b16 %v226
        %v317 = vunpack.c.l.b16 %v227
        %v318 = vunpack.c.h.b16 %v227
        %v319 = vunpack.c.l.b16 %v228
        %v320 = vunpack.c.h.b16 %v228
        %v321 = vunpack.c.l.b16 %v229
        %v322 = vunpack.c.h.b16 %v229
        %v323 = vunpack.c.l.b16 %v230
        %v324 = vunpack.c.h.b16 %v230
        %v325 = vunpack.c.l.b16 %v231
        %v326 = vunpack.c.h.b16 %v231
        %v327 = vunpack.c.l.b16 %v232
        %v328 = vunpack.c.h.b16 %v232
        %v329 = vpack.c.b16 %v267, %v265
        %v330 = vpack.c.b16 %v268, %v266
        %v331 = vpack.c.b16 %v271, %v269
        %v332 = vpack.c.b16 %v272, %v270
        %v333 = vpack.c.b16 %v275, %v273
        %v334 = vpack.c.b16 %v276, %v274
        %v335 = vpack.c.b16 %v279, %v277
        %v336 = vpack.c.b16 %v280, %v278
        %v337 = vpack.c.b16 %v283, %v281
        %v338 = vpack.c.b16 %v284, %v282
        %v339 = vpack.c.b16 %v287, %v285
        %v340 = vpack.c.b16 %v288, %v286
        %v341 = vpack.c.b16 %v291, %v289
        %v342 = vpack.c.b16 %v292, %v290
        %v343 = vpack.c.b16 %v295, %v293
        %v344 = vpack.c.b16 %v296, %v294
        %v345 = vpack.c.b16 %v299, %v297
        %v346 = vpack.c.b16 %v300, %v298
        %v347 = vpack.c.b16 %v303, %v301
        %v348 = vpack.c.b16 %v304, %v302
        %v349 = vpack.c.b16 %v307, %v305
        %v350 = vpack.c.b16 %v308, %v306
        %v351 = vpack.c.b16 %v311, %v309
        %v352 = vpack.c.b16 %v312, %v310
        %v353 = vpack.c.b16 %v315, %v313
        %v354 = vpack.c.b16 %v316, %v314
        %v355 = vpack.c.b16 %v319, %v317
        %v356 = vpack.c.b16 %v320, %v318
        %v357 = vpack.c.b16 %v323, %v321
        %v358 = vpack.c.b16 %v324, %v322
        %v359 = vpack.c.b16 %v327, %v325
        %v360 = vpack.c.b16 %v328, %v326
        %393 = vmatprep.subr.bf16.mxu0 %v344
        %394 = vmatpush1.bf16.msra.mxu0 %v343
        %395 = vmatprep.subr.bf16.mxu0 %v342
        %396 = vmatpush1.bf16.msra.mxu0 %v341
        %397 = vmatprep.subr.bf16.mxu0 %v340
        %398 = vmatpush1.bf16.msra.mxu0 %v339
        %399 = vmatprep.subr.bf16.mxu0 %v338
        %400 = vmatpush1.bf16.msra.mxu0 %v337
        %401 = vmatprep.subr.bf16.mxu0 %v336
        %402 = vmatpush1.bf16.msra.mxu0 %v335
        %403 = vmatprep.subr.bf16.mxu0 %v334
        %404 = vmatpush1.bf16.msra.mxu0 %v333
        %405 = vmatprep.subr.bf16.mxu0 %v332
        %406 = vmatpush1.bf16.msra.mxu0 %v331
        %407 = vmatprep.subr.bf16.mxu0 %v330
        %408 = vmatpush1.bf16.msra.mxu0 %v329
        %409 = vmatprep.subr.bf16.mxu0 %v360
        %410 = vmatpush2.bf16.msra.mxu0 %v359
        %411 = vmatprep.subr.bf16.mxu0 %v358
        %412 = vmatpush2.bf16.msra.mxu0 %v357
        %413 = vmatprep.subr.bf16.mxu0 %v356
        %414 = vmatpush2.bf16.msra.mxu0 %v355
        %415 = vmatprep.subr.bf16.mxu0 %v354
        %416 = vmatpush2.bf16.msra.mxu0 %v353
        %417 = vmatprep.subr.bf16.mxu0 %v352
        %418 = vmatpush2.bf16.msra.mxu0 %v351
        %419 = vmatprep.subr.bf16.mxu0 %v350
        %420 = vmatpush2.bf16.msra.mxu0 %v349
        %421 = vmatprep.subr.bf16.mxu0 %v348
        %422 = vmatpush2.bf16.msra.mxu0 %v347
        %423 = vmatprep.subr.bf16.mxu0 %v346
        %424 = vmatpush2.bf16.msra.mxu0 %v345
        %425 = vmatprep.mubr.bf16.mxu0 %v200
        %426 = vmatmul.mubr.bf16.gmra.mxu0 %v199
        %v427 = vpop.f32.mrf.mxu0
        %v428 = vadd.f32 0.0, %v427
        %v429 = vpop.f32.mrf.mxu0
        %v430 = vadd.f32 0.0, %v429
        %v431 = vpop.f32.mrf.mxu0
        %v432 = vpop.f32.mrf.mxu0
        %433 = vdwg.mxu0
        %v436 = vcombine.low %v428, %v430
        %438 = vst [vmem:[%s194] sm:$0xff] %v436
        %v439 = vld [vmem:[#allocation2 + $0x8] sm:$0xff]
        %v440 = vld [vmem:[#allocation2 + $0x20] sm:$0xff]
        %v441 = vld [vmem:[#allocation2 + $0x38] sm:$0xff]
        %v442 = vld [vmem:[#allocation2 + $0x50] sm:$0xff]
        %v443 = vld [vmem:[#allocation2 + $0x68] sm:$0xff]
        %v444 = vld [vmem:[#allocation2 + $0x80] sm:$0xff]
        %v445 = vld [vmem:[#allocation2 + $0x98] sm:$0xff]
        %v446 = vld [vmem:[#allocation2 + $0xb0] sm:$0xff]
        %v447 = vld [vmem:[#allocation2 + $0xc8] sm:$0xff]
        %v448 = vld [vmem:[#allocation2 + $0xe0] sm:$0xff]
        %v449 = vld [vmem:[#allocation2 + $0xf8] sm:$0xff]
        %v450 = vld [vmem:[#allocation2 + $0x110] sm:$0xff]
        %v451 = vld [vmem:[#allocation2 + $0x128] sm:$0xff]
        %v452 = vld [vmem:[#allocation2 + $0x140] sm:$0xff]
        %v453 = vld [vmem:[#allocation2 + $0x158] sm:$0xff]
        %v454 = vld [vmem:[#allocation2 + $0x170] sm:$0xff]
        %v455 = vld [vmem:[#allocation2 + $0x188] sm:$0xff]
        %v456 = vld [vmem:[#allocation2 + $0x1a0] sm:$0xff]
        %v457 = vld [vmem:[#allocation2 + $0x1b8] sm:$0xff]
        %v458 = vld [vmem:[#allocation2 + $0x1d0] sm:$0xff]
        %v459 = vld [vmem:[#allocation2 + $0x1e8] sm:$0xff]
        %v460 = vld [vmem:[#allocation2 + $0x200] sm:$0xff]
        %v461 = vld [vmem:[#allocation2 + $0x218] sm:$0xff]
        %v462 = vld [vmem:[#allocation2 + $0x230] sm:$0xff]
        %v463 = vld [vmem:[#allocation2 + $0x248] sm:$0xff]
        %v464 = vld [vmem:[#allocation2 + $0x260] sm:$0xff]
        %v465 = vld [vmem:[#allocation2 + $0x278] sm:$0xff]
        %v466 = vld [vmem:[#allocation2 + $0x290] sm:$0xff]
        %v467 = vld [vmem:[#allocation2 + $0x2a8] sm:$0xff]
        %v468 = vld [vmem:[#allocation2 + $0x2c0] sm:$0xff]
        %v469 = vld [vmem:[#allocation2 + $0x2d8] sm:$0xff]
        %v470 = vld [vmem:[#allocation2 + $0x2f0] sm:$0xff]
        %v503 = vunpack.c.l.b16 %v439
        %v504 = vunpack.c.h.b16 %v439
        %v505 = vunpack.c.l.b16 %v440
        %v506 = vunpack.c.h.b16 %v440
        %v507 = vunpack.c.l.b16 %v441
        %v508 = vunpack.c.h.b16 %v441
        %v509 = vunpack.c.l.b16 %v442
        %v510 = vunpack.c.h.b16 %v442
        %v511 = vunpack.c.l.b16 %v443
        %v512 = vunpack.c.h.b16 %v443
        %v513 = vunpack.c.l.b16 %v444
        %v514 = vunpack.c.h.b16 %v444
        %v515 = vunpack.c.l.b16 %v445
        %v516 = vunpack.c.h.b16 %v445
        %v517 = vunpack.c.l.b16 %v446
        %v518 = vunpack.c.h.b16 %v446
        %v519 = vunpack.c.l.b16 %v447
        %v520 = vunpack.c.h.b16 %v447
        %v521 = vunpack.c.l.b16 %v448
        %v522 = vunpack.c.h.b16 %v448
        %v523 = vunpack.c.l.b16 %v449
        %v524 = vunpack.c.h.b16 %v449
        %v525 = vunpack.c.l.b16 %v450
        %v526 = vunpack.c.h.b16 %v450
        %v527 = vunpack.c.l.b16 %v451
        %v528 = vunpack.c.h.b16 %v451
        %v529 = vunpack.c.l.b16 %v452
        %v530 = vunpack.c.h.b16 %v452
        %v531 = vunpack.c.l.b16 %v453
        %v532 = vunpack.c.h.b16 %v453
        %v533 = vunpack.c.l.b16 %v454
        %v534 = vunpack.c.h.b16 %v454
        %v535 = vunpack.c.l.b16 %v455
        %v536 = vunpack.c.h.b16 %v455
        %v537 = vunpack.c.l.b16 %v456
        %v538 = vunpack.c.h.b16 %v456
        %v539 = vunpack.c.l.b16 %v457
        %v540 = vunpack.c.h.b16 %v457
        %v541 = vunpack.c.l.b16 %v458
        %v542 = vunpack.c.h.b16 %v458
        %v543 = vunpack.c.l.b16 %v459
        %v544 = vunpack.c.h.b16 %v459
        %v545 = vunpack.c.l.b16 %v460
        %v546 = vunpack.c.h.b16 %v460
        %v547 = vunpack.c.l.b16 %v461
        %v548 = vunpack.c.h.b16 %v461
        %v549 = vunpack.c.l.b16 %v462
        %v550 = vunpack.c.h.b16 %v462
        %v551 = vunpack.c.l.b16 %v463
        %v552 = vunpack.c.h.b16 %v463
        %v553 = vunpack.c.l.b16 %v464
        %v554 = vunpack.c.h.b16 %v464
        %v555 = vunpack.c.l.b16 %v465
        %v556 = vunpack.c.h.b16 %v465
        %v557 = vunpack.c.l.b16 %v466
        %v558 = vunpack.c.h.b16 %v466
        %v559 = vunpack.c.l.b16 %v467
        %v560 = vunpack.c.h.b16 %v467
        %v561 = vunpack.c.l.b16 %v468
        %v562 = vunpack.c.h.b16 %v468
        %v563 = vunpack.c.l.b16 %v469
        %v564 = vunpack.c.h.b16 %v469
        %v565 = vunpack.c.l.b16 %v470
        %v566 = vunpack.c.h.b16 %v470
        %v567 = vpack.c.b16 %v505, %v503
        %v568 = vpack.c.b16 %v506, %v504
        %v569 = vpack.c.b16 %v509, %v507
        %v570 = vpack.c.b16 %v510, %v508
        %v571 = vpack.c.b16 %v513, %v511
        %v572 = vpack.c.b16 %v514, %v512
        %v573 = vpack.c.b16 %v517, %v515
        %v574 = vpack.c.b16 %v518, %v516
        %v575 = vpack.c.b16 %v521, %v519
        %v576 = vpack.c.b16 %v522, %v520
        %v577 = vpack.c.b16 %v525, %v523
        %v578 = vpack.c.b16 %v526, %v524
        %v579 = vpack.c.b16 %v529, %v527
        %v580 = vpack.c.b16 %v530, %v528
        %v581 = vpack.c.b16 %v533, %v531
        %v582 = vpack.c.b16 %v534, %v532
        %v583 = vpack.c.b16 %v537, %v535
        %v584 = vpack.c.b16 %v538, %v536
        %v585 = vpack.c.b16 %v541, %v539
        %v586 = vpack.c.b16 %v542, %v540
        %v587 = vpack.c.b16 %v545, %v543
        %v588 = vpack.c.b16 %v546, %v544
        %v589 = vpack.c.b16 %v549, %v547
        %v590 = vpack.c.b16 %v550, %v548
        %v591 = vpack.c.b16 %v553, %v551
        %v592 = vpack.c.b16 %v554, %v552
        %v593 = vpack.c.b16 %v557, %v555
        %v594 = vpack.c.b16 %v558, %v556
        %v595 = vpack.c.b16 %v561, %v559
        %v596 = vpack.c.b16 %v562, %v560
        %v597 = vpack.c.b16 %v565, %v563
        %v598 = vpack.c.b16 %v566, %v564
        %631 = vmatprep.subr.bf16.mxu0 %v582
        %632 = vmatpush1.bf16.msra.mxu0 %v581
        %633 = vmatprep.subr.bf16.mxu0 %v580
        %634 = vmatpush1.bf16.msra.mxu0 %v579
        %635 = vmatprep.subr.bf16.mxu0 %v578
        %636 = vmatpush1.bf16.msra.mxu0 %v577
        %637 = vmatprep.subr.bf16.mxu0 %v576
        %638 = vmatpush1.bf16.msra.mxu0 %v575
        %639 = vmatprep.subr.bf16.mxu0 %v574
        %640 = vmatpush1.bf16.msra.mxu0 %v573
        %641 = vmatprep.subr.bf16.mxu0 %v572
        %642 = vmatpush1.bf16.msra.mxu0 %v571
        %643 = vmatprep.subr.bf16.mxu0 %v570
        %644 = vmatpush1.bf16.msra.mxu0 %v569
        %645 = vmatprep.subr.bf16.mxu0 %v568
        %646 = vmatpush1.bf16.msra.mxu0 %v567
        %647 = vmatprep.subr.bf16.mxu0 %v598
        %648 = vmatpush2.bf16.msra.mxu0 %v597
        %649 = vmatprep.subr.bf16.mxu0 %v596
        %650 = vmatpush2.bf16.msra.mxu0 %v595
        %651 = vmatprep.subr.bf16.mxu0 %v594
        %652 = vmatpush2.bf16.msra.mxu0 %v593
        %653 = vmatprep.subr.bf16.mxu0 %v592
        %654 = vmatpush2.bf16.msra.mxu0 %v591
        %655 = vmatprep.subr.bf16.mxu0 %v590
        %656 = vmatpush2.bf16.msra.mxu0 %v589
        %657 = vmatprep.subr.bf16.mxu0 %v588
        %658 = vmatpush2.bf16.msra.mxu0 %v587
        %659 = vmatprep.subr.bf16.mxu0 %v586
        %660 = vmatpush2.bf16.msra.mxu0 %v585
        %661 = vmatprep.subr.bf16.mxu0 %v584
        %662 = vmatpush2.bf16.msra.mxu0 %v583
        %663 = vmatprep.mubr.bf16.mxu0 %v200
        %664 = vmatmul.mubr.bf16.gmra.mxu0 %v199
        %v665 = vpop.f32.mrf.mxu0
        %v666 = vadd.f32 0.0, %v665
        %v667 = vpop.f32.mrf.mxu0
        %v668 = vadd.f32 0.0, %v667
        %v669 = vpop.f32.mrf.mxu0
        %v670 = vpop.f32.mrf.mxu0
        %671 = vdwg.mxu0
        %v674 = vcombine.low %v666, %v668
        %s676 = scalar_lea.vmem %s194, 8
        %677 = vst [vmem:[%s676] sm:$0xff] %v674
        %v678 = vld [vmem:[#allocation2 + $0x10] sm:$0xff]
        %v679 = vld [vmem:[#allocation2 + $0x28] sm:$0xff]
        %v680 = vld [vmem:[#allocation2 + $0x40] sm:$0xff]
        %v681 = vld [vmem:[#allocation2 + $0x58] sm:$0xff]
        %v682 = vld [vmem:[#allocation2 + $0x70] sm:$0xff]
        %v683 = vld [vmem:[#allocation2 + $0x88] sm:$0xff]
        %v684 = vld [vmem:[#allocation2 + $0xa0] sm:$0xff]
        %v685 = vld [vmem:[#allocation2 + $0xb8] sm:$0xff]
        %v686 = vld [vmem:[#allocation2 + $0xd0] sm:$0xff]
        %v687 = vld [vmem:[#allocation2 + $0xe8] sm:$0xff]
        %v688 = vld [vmem:[#allocation2 + $0x100] sm:$0xff]
        %v689 = vld [vmem:[#allocation2 + $0x118] sm:$0xff]
        %v690 = vld [vmem:[#allocation2 + $0x130] sm:$0xff]
        %v691 = vld [vmem:[#allocation2 + $0x148] sm:$0xff]
        %v692 = vld [vmem:[#allocation2 + $0x160] sm:$0xff]
        %v693 = vld [vmem:[#allocation2 + $0x178] sm:$0xff]
        %v694 = vld [vmem:[#allocation2 + $0x190] sm:$0xff]
        %v695 = vld [vmem:[#allocation2 + $0x1a8] sm:$0xff]
        %v696 = vld [vmem:[#allocation2 + $0x1c0] sm:$0xff]
        %v697 = vld [vmem:[#allocation2 + $0x1d8] sm:$0xff]
        %v698 = vld [vmem:[#allocation2 + $0x1f0] sm:$0xff]
        %v699 = vld [vmem:[#allocation2 + $0x208] sm:$0xff]
        %v700 = vld [vmem:[#allocation2 + $0x220] sm:$0xff]
        %v701 = vld [vmem:[#allocation2 + $0x238] sm:$0xff]
        %v702 = vld [vmem:[#allocation2 + $0x250] sm:$0xff]
        %v703 = vld [vmem:[#allocation2 + $0x268] sm:$0xff]
        %v704 = vld [vmem:[#allocation2 + $0x280] sm:$0xff]
        %v705 = vld [vmem:[#allocation2 + $0x298] sm:$0xff]
        %v706 = vld [vmem:[#allocation2 + $0x2b0] sm:$0xff]
        %v707 = vld [vmem:[#allocation2 + $0x2c8] sm:$0xff]
        %v708 = vld [vmem:[#allocation2 + $0x2e0] sm:$0xff]
        %v709 = vld [vmem:[#allocation2 + $0x2f8] sm:$0xff]
        %v742 = vunpack.c.l.b16 %v678
        %v743 = vunpack.c.h.b16 %v678
        %v744 = vunpack.c.l.b16 %v679
        %v745 = vunpack.c.h.b16 %v679
        %v746 = vunpack.c.l.b16 %v680
        %v747 = vunpack.c.h.b16 %v680
        %v748 = vunpack.c.l.b16 %v681
        %v749 = vunpack.c.h.b16 %v681
        %v750 = vunpack.c.l.b16 %v682
        %v751 = vunpack.c.h.b16 %v682
        %v752 = vunpack.c.l.b16 %v683
        %v753 = vunpack.c.h.b16 %v683
        %v754 = vunpack.c.l.b16 %v684
        %v755 = vunpack.c.h.b16 %v684
        %v756 = vunpack.c.l.b16 %v685
        %v757 = vunpack.c.h.b16 %v685
        %v758 = vunpack.c.l.b16 %v686
        %v759 = vunpack.c.h.b16 %v686
        %v760 = vunpack.c.l.b16 %v687
        %v761 = vunpack.c.h.b16 %v687
        %v762 = vunpack.c.l.b16 %v688
        %v763 = vunpack.c.h.b16 %v688
        %v764 = vunpack.c.l.b16 %v689
        %v765 = vunpack.c.h.b16 %v689
        %v766 = vunpack.c.l.b16 %v690
        %v767 = vunpack.c.h.b16 %v690
        %v768 = vunpack.c.l.b16 %v691
        %v769 = vunpack.c.h.b16 %v691
        %v770 = vunpack.c.l.b16 %v692
        %v771 = vunpack.c.h.b16 %v692
        %v772 = vunpack.c.l.b16 %v693
        %v773 = vunpack.c.h.b16 %v693
        %v774 = vunpack.c.l.b16 %v694
        %v775 = vunpack.c.h.b16 %v694
        %v776 = vunpack.c.l.b16 %v695
        %v777 = vunpack.c.h.b16 %v695
        %v778 = vunpack.c.l.b16 %v696
        %v779 = vunpack.c.h.b16 %v696
        %v780 = vunpack.c.l.b16 %v697
        %v781 = vunpack.c.h.b16 %v697
        %v782 = vunpack.c.l.b16 %v698
        %v783 = vunpack.c.h.b16 %v698
        %v784 = vunpack.c.l.b16 %v699
        %v785 = vunpack.c.h.b16 %v699
        %v786 = vunpack.c.l.b16 %v700
        %v787 = vunpack.c.h.b16 %v700
        %v788 = vunpack.c.l.b16 %v701
        %v789 = vunpack.c.h.b16 %v701
        %v790 = vunpack.c.l.b16 %v702
        %v791 = vunpack.c.h.b16 %v702
        %v792 = vunpack.c.l.b16 %v703
        %v793 = vunpack.c.h.b16 %v703
        %v794 = vunpack.c.l.b16 %v704
        %v795 = vunpack.c.h.b16 %v704
        %v796 = vunpack.c.l.b16 %v705
        %v797 = vunpack.c.h.b16 %v705
        %v798 = vunpack.c.l.b16 %v706
        %v799 = vunpack.c.h.b16 %v706
        %v800 = vunpack.c.l.b16 %v707
        %v801 = vunpack.c.h.b16 %v707
        %v802 = vunpack.c.l.b16 %v708
        %v803 = vunpack.c.h.b16 %v708
        %v804 = vunpack.c.l.b16 %v709
        %v805 = vunpack.c.h.b16 %v709
        %v806 = vpack.c.b16 %v744, %v742
        %v807 = vpack.c.b16 %v745, %v743
        %v808 = vpack.c.b16 %v748, %v746
        %v809 = vpack.c.b16 %v749, %v747
        %v810 = vpack.c.b16 %v752, %v750
        %v811 = vpack.c.b16 %v753, %v751
        %v812 = vpack.c.b16 %v756, %v754
        %v813 = vpack.c.b16 %v757, %v755
        %v814 = vpack.c.b16 %v760, %v758
        %v815 = vpack.c.b16 %v761, %v759
        %v816 = vpack.c.b16 %v764, %v762
        %v817 = vpack.c.b16 %v765, %v763
        %v818 = vpack.c.b16 %v768, %v766
        %v819 = vpack.c.b16 %v769, %v767
        %v820 = vpack.c.b16 %v772, %v770
        %v821 = vpack.c.b16 %v773, %v771
        %v822 = vpack.c.b16 %v776, %v774
        %v823 = vpack.c.b16 %v777, %v775
        %v824 = vpack.c.b16 %v780, %v778
        %v825 = vpack.c.b16 %v781, %v779
        %v826 = vpack.c.b16 %v784, %v782
        %v827 = vpack.c.b16 %v785, %v783
        %v828 = vpack.c.b16 %v788, %v786
        %v829 = vpack.c.b16 %v789, %v787
        %v830 = vpack.c.b16 %v792, %v790
        %v831 = vpack.c.b16 %v793, %v791
        %v832 = vpack.c.b16 %v796, %v794
        %v833 = vpack.c.b16 %v797, %v795
        %v834 = vpack.c.b16 %v800, %v798
        %v835 = vpack.c.b16 %v801, %v799
        %v836 = vpack.c.b16 %v804, %v802
        %v837 = vpack.c.b16 %v805, %v803
        %870 = vmatprep.subr.bf16.mxu0 %v821
        %871 = vmatpush1.bf16.msra.mxu0 %v820
        %872 = vmatprep.subr.bf16.mxu0 %v819
        %873 = vmatpush1.bf16.msra.mxu0 %v818
        %874 = vmatprep.subr.bf16.mxu0 %v817
        %875 = vmatpush1.bf16.msra.mxu0 %v816
        %876 = vmatprep.subr.bf16.mxu0 %v815
        %877 = vmatpush1.bf16.msra.mxu0 %v814
        %878 = vmatprep.subr.bf16.mxu0 %v813
        %879 = vmatpush1.bf16.msra.mxu0 %v812
        %880 = vmatprep.subr.bf16.mxu0 %v811
        %881 = vmatpush1.bf16.msra.mxu0 %v810
        %882 = vmatprep.subr.bf16.mxu0 %v809
        %883 = vmatpush1.bf16.msra.mxu0 %v808
        %884 = vmatprep.subr.bf16.mxu0 %v807
        %885 = vmatpush1.bf16.msra.mxu0 %v806
        %886 = vmatprep.subr.bf16.mxu0 %v837
        %887 = vmatpush2.bf16.msra.mxu0 %v836
        %888 = vmatprep.subr.bf16.mxu0 %v835
        %889 = vmatpush2.bf16.msra.mxu0 %v834
        %890 = vmatprep.subr.bf16.mxu0 %v833
        %891 = vmatpush2.bf16.msra.mxu0 %v832
        %892 = vmatprep.subr.bf16.mxu0 %v831
        %893 = vmatpush2.bf16.msra.mxu0 %v830
        %894 = vmatprep.subr.bf16.mxu0 %v829
        %895 = vmatpush2.bf16.msra.mxu0 %v828
        %896 = vmatprep.subr.bf16.mxu0 %v827
        %897 = vmatpush2.bf16.msra.mxu0 %v826
        %898 = vmatprep.subr.bf16.mxu0 %v825
        %899 = vmatpush2.bf16.msra.mxu0 %v824
        %900 = vmatprep.subr.bf16.mxu0 %v823
        %901 = vmatpush2.bf16.msra.mxu0 %v822
        %902 = vmatprep.mubr.bf16.mxu0 %v200
        %903 = vmatmul.mubr.bf16.gmra.mxu0 %v199
        %v904 = vpop.f32.mrf.mxu0
        %v905 = vadd.f32 0.0, %v904
        %v906 = vpop.f32.mrf.mxu0
        %v907 = vadd.f32 0.0, %v906
        %v908 = vpop.f32.mrf.mxu0
        %v909 = vpop.f32.mrf.mxu0
        %910 = vdwg.mxu0
        %v913 = vcombine.low %v905, %v907
        %s915 = scalar_lea.vmem %s194, 16
        %916 = vst [vmem:[%s915] sm:$0xff] %v913
        %s917 = scalar_lea.vmem %s194, 24
        %918 = vst [vmem:[%s917] sm:$0xff] %v195
        %p919 = scmp.lt.s32.totalorder %s18, 1
        %s920 = scalar_select %p919, %s18, 1
        %p921 = scmp.lt.s32.totalorder %s19, 0
        %s922 = scalar_select %p921, %s19, 0
        %s923 = smul.addr %s922, 2
        %s924 = smul.addr %s920, 8
        %s925 = sadd.s32 %s923, %s924
        %s926 = smul.addr %s925, 4
        %s927 = scalar_lea.vmem %s2, %s926
        // Predicated region
        $region33: #{spatial_pyramid_pooling.1} parent=27 // pred_check
          %p928 = pneg %p95
        $region34: #{spatial_pyramid_pooling.1} parent=27 // pred_check_branch
          %930 = sbr.rel (%p928) target = $region36
        $region35: #{spatial_pyramid_pooling.1} parent=27 // pred_region
          _
        $region36: #{spatial_pyramid_pooling.1} parent=27 // pred_fallthru
          _
      $region28: #{spatial_pyramid_pooling.1} parent=5 // pred_fallthru
        _
      %p931 = scmp.le.s32.totalorder 2, %s9
      // Predicated region
      $region37: #{spatial_pyramid_pooling.1} parent=5 // pred_check
        %p932 = pneg %p931
      $region38: #{spatial_pyramid_pooling.1} parent=5 // pred_check_branch
        %934 = sbr.rel (%p932) target = $region40
      $region39: #{spatial_pyramid_pooling.1} parent=5 // pred_region
        %s935 = ssub.s32 %s9, 2
        // Predicated region
        $region41: #{spatial_pyramid_pooling.1} parent=39 // pred_check
          %p936 = pneg %p101
        $region42: #{spatial_pyramid_pooling.1} parent=39 // pred_check_branch
          %938 = sbr.rel (%p936) target = $region44
        $region43: #{spatial_pyramid_pooling.1} parent=39 // pred_region
          %p939 = scmp.lt.s32.totalorder %s20, 1
          %s940 = scalar_select %p939, %s20, 1
          %p941 = scmp.lt.s32.totalorder %s21, 0
          %s942 = scalar_select %p941, %s21, 0
          %s943 = smul.addr %s942, 2
          %s944 = smul.addr %s940, 8
          %s945 = sadd.s32 %s943, %s944
          %s946 = smul.addr %s945, 4
          %s947 = scalar_lea.vmem %s2, %s946
        $region44: #{spatial_pyramid_pooling.1} parent=39 // pred_fallthru
          _
      $region40: #{spatial_pyramid_pooling.1} parent=5 // pred_fallthru
        _
    $region6: #{spatial_pyramid_pooling.1} parent=1 // loop_footer
      %s13 = sadd.s32 1, %s9
    $region7: #{spatial_pyramid_pooling.1} parent=1 // loop_footer_branch
      %8 = sbr.rel target = $region3
    $region8: #{spatial_pyramid_pooling.1} parent=1 // loop_exit
      _
    %948 = vsyncpa [#allocation3], 1
    %s949 = scalar_lea.sflag [#allocation3], 1
    %950 = vsyncpa %s949, 1

</llo_original>
